<compile_context>
chip_gen: v7x
topology: tpu7x:2x2x1
jax: 0.10.0
libtpu: 0.0.40
codegen_flags: <defaults>
</compile_context>

<pallas_src>
import math

import jax
import jax.numpy as jnp
from jax.experimental import pallas as pl
from jax.experimental.pallas import tpu as pltpu


def _linear_kernel(x_ref, w_ref, b_ref, o_ref):
    # x_ref: (TILE_R, K), w_ref: (K, COUT), b_ref: (1, COUT), o_ref: (TILE_R, COUT)
    acc = jnp.dot(x_ref[...], w_ref[...], preferred_element_type=jnp.float32)
    o_ref[...] = (acc + b_ref[...]).astype(o_ref.dtype)


def _vmem_capacity_bytes():
    """Per-TensorCore VMEM capacity; conservative fallback if the query is unavailable."""
    try:
        cap = int(getattr(pltpu.get_tpu_info(), "vmem_capacity_bytes", 0))
        if cap > 0:
            return cap
    except Exception:
        pass
    return 64 * 1024 * 1024  # v7x per-TC value; safe lower bound for v5e/v6e too


def _pick_tile_rows(n_rows, in_row_bytes, out_row_bytes, resident_bytes,
                    budget_bytes, min_steps=4, max_tile=32768):
    """Largest multiple-of-8 row tile such that double-buffered in/out tiles plus the
    resident weight/bias fit within budget_bytes, while keeping >= min_steps grid steps
    when there are enough rows (pipelining + v7x megacore)."""
    if n_rows <= 8:
        return max(n_rows, 1)
    per_row = 2 * (in_row_bytes + out_row_bytes)          # double-buffered streaming tiles
    avail = max(budget_bytes - resident_bytes, per_row * 8)
    cap_vmem = max(8, avail // per_row)                    # final fit check is built in
    cap_steps = max(8, n_rows // min_steps)                # keep the grid multi-step
    tile = min(n_rows, cap_vmem, cap_steps, max_tile)
    return max(8, (tile // 8) * 8)


def _launch_linear(x2d, w2d, b2d, budget_bytes, vmem_cap):
    """x2d: [R, K], w2d: [K, COUT], b2d: [1, COUT] -> [R, COUT] via a row-tiled pallas_call."""
    n_rows, k = x2d.shape
    cout = w2d.shape[1]
    itemsize = jnp.dtype(x2d.dtype).itemsize

    resident = (k * cout + cout) * itemsize                # weight + bias stay in VMEM
    tile_r = _pick_tile_rows(n_rows, k * itemsize, cout * itemsize, resident, budget_bytes)
    need = 2 * tile_r * (k + cout) * itemsize + resident
    # Size the scoped-VMEM request to actual need (plus headroom), never above the chip.
    vmem_limit = int(min(vmem_cap, max(2 * need, 4 * 1024 * 1024)))
    grid = (pl.cdiv(n_rows, tile_r),)

    return pl.pallas_call(
        _linear_kernel,
        out_shape=jax.ShapeDtypeStruct((n_rows, cout), x2d.dtype),
        grid=grid,
        in_specs=[
            pl.BlockSpec((tile_r, k), lambda i: (i, 0)),   # streamed batch tile
            pl.BlockSpec((k, cout), lambda i: (0, 0)),     # resident weight
            pl.BlockSpec((1, cout), lambda i: (0, 0)),     # resident bias
        ],
        out_specs=pl.BlockSpec((tile_r, cout), lambda i: (i, 0)),
        compiler_params=pltpu.CompilerParams(
            dimension_semantics=("parallel",),             # shard batch tiles across TCs (v7x)
            vmem_limit_bytes=vmem_limit,
        ),
        cost_estimate=pl.CostEstimate(
            flops=2 * n_rows * k * cout,
            bytes_accessed=itemsize * (n_rows * k + n_rows * cout + k * cout + cout),
            transcendentals=0,
        ),
    )(x2d, w2d, b2d)


def logistic_regression_forward(x, weight, bias):
    """x: [N, D] f32, weight: [C, D] f32 (PyTorch nn.Linear layout), bias: [C] f32 -> [N, C] f32."""
    N, D = x.shape
    C = weight.shape[0]
    dt = x.dtype
    itemsize = jnp.dtype(dt).itemsize

    vmem_cap = _vmem_capacity_bytes()
    budget = vmem_cap // 2                                 # keep the kernel well under half of VMEM

    wt = weight.astype(dt).T                               # [D, C]
    b2 = bias.astype(dt).reshape(1, C)

    # Row-packing factor: smallest P with (P * C) % 128 == 0 -> lane-dense output.
    P = 128 // math.gcd(128, C)
    packed_w_bytes = (P * D) * (P * C) * itemsize
    use_packing = (P > 1) and (packed_w_bytes <= 2 * 1024 * 1024)
    # TODO(synk): very large D*C with C not a multiple of 128 falls back to the masked-store
    # path below; a K-tiled variant would be needed to pack those shapes too.

    if use_packing:
        n_pad = ((N + P - 1) // P) * P
        x_p = x if n_pad == N else jnp.pad(x, ((0, n_pad - N), (0, 0)))
        x_p = x_p.reshape(n_pad // P, P * D)               # free row-major reshape
        w_p = jnp.kron(jnp.eye(P, dtype=dt), wt)           # block-diag [P*D, P*C], built once
        b_p = jnp.tile(bias.astype(dt), P).reshape(1, P * C)
        out_p = _launch_linear(x_p, w_p, b_p, budget, vmem_cap)   # [n_pad/P, P*C]
        # [n_pad/P, P*C] row-major == [n_pad, C] row-major, so this reshape is free.
        return out_p.reshape(n_pad, C)[:N]

    # Fallback (C already a multiple of 128, or packed weight too large): plain [N,D]@[D,C].
    # If C < 128 here, masked lane stores are an accepted cost of keeping module semantics.
    return _launch_linear(x, wt, b2, budget, vmem_cap)


if __name__ == "__main__":
    # Shapes implied by the module: num_dim=32 features, num_class=8 classes.
    # Batch 2048 rows so the packed grid really pipelines (4 tiles of 512 original rows).
    N, num_dim, num_class = 2048, 32, 8

    key = jax.random.PRNGKey(0)
    kx, kw, kb = jax.random.split(key, 3)

    x = jax.random.normal(kx, (N, num_dim), dtype=jnp.float32)

    # Deterministic nn.Linear-style init: U(-1/sqrt(fan_in), 1/sqrt(fan_in))
    bound = 1.0 / (num_dim ** 0.5)
    weight = jax.random.uniform(kw, (num_class, num_dim), dtype=jnp.float32,
                                minval=-bound, maxval=bound)
    bias = jax.random.uniform(kb, (num_class,), dtype=jnp.float32,
                              minval=-bound, maxval=bound)

    logits = logistic_regression_forward(x, weight, bias)
    logits = jax.block_until_ready(logits)

    # Reference check against plain JAX
    ref = x @ weight.T + bias
    assert logits.shape == (N, num_class)
    assert jnp.allclose(logits, ref, atol=1e-5, rtol=1e-5), "mismatch vs reference"

    print("KERNEL_OK")
</pallas_src>

<mosaic_0001>
module attributes {stable_mosaic.version = 11 : i64} {
  func.func @_linear_kernel(%arg0: i32, %arg1: memref<32x512xf32, #tpu.memory_space<vmem>>, %arg2: memref<512x128xf32, #tpu.memory_space<vmem>>, %arg3: memref<1x128xf32, #tpu.memory_space<vmem>>, %arg4: memref<32x128xf32, #tpu.memory_space<vmem>>) attributes {dimension_semantics = [#tpu.dimension_semantics<parallel>], iteration_bounds = array<i64: 4>, scalar_prefetch = 0 : i64, scratch_operands = 0 : i64, tpu.core_type = #tpu.core_type<tc>, window_params = [{transform_indices = @transform_0, window_bounds = array<i64: 32, 512>}, {pipeline_mode = #tpu.pipeline_mode<synchronous>, transform_indices = @transform_1, window_bounds = array<i64: 512, 128>}, {pipeline_mode = #tpu.pipeline_mode<synchronous>, transform_indices = @transform_2, window_bounds = array<i64: 1, 128>}, {transform_indices = @transform_3, window_bounds = array<i64: 32, 128>}]} {
    %c0 = arith.constant 0 : index
    %c0_0 = arith.constant 0 : index
    %0 = vector.load %arg1[%c0, %c0_0] : memref<32x512xf32, #tpu.memory_space<vmem>>, vector<32x512xf32>
    %c0_1 = arith.constant 0 : index
    %c0_2 = arith.constant 0 : index
    %1 = vector.load %arg2[%c0_1, %c0_2] : memref<512x128xf32, #tpu.memory_space<vmem>>, vector<512x128xf32>
    %cst = arith.constant dense<0.000000e+00> : vector<32x128xf32>
    %2 = tpu.matmul %0, %1, %cst {dimension_numbers = #tpu.dot_dimension_numbers<[1], [0], [0], [1], [0, 0, 1, 1], [], []>} : vector<32x512xf32>, vector<512x128xf32>, vector<32x128xf32> -> vector<32x128xf32>
    %c0_3 = arith.constant 0 : index
    %c0_4 = arith.constant 0 : index
    %3 = vector.load %arg3[%c0_3, %c0_4] : memref<1x128xf32, #tpu.memory_space<vmem>>, vector<1x128xf32>
    %4 = vector.broadcast %3 : vector<1x128xf32> to vector<32x128xf32>
    %5 = arith.addf %2, %4 : vector<32x128xf32>
    %c0_5 = arith.constant 0 : index
    %c0_6 = arith.constant 0 : index
    %6 = vector.load %arg4[%c0_5, %c0_6] : memref<32x128xf32, #tpu.memory_space<vmem>>, vector<32x128xf32>
    tpu.vector_store %arg4[%c0_5, %c0_6], %5 {strides = array<i32>} : memref<32x128xf32, #tpu.memory_space<vmem>>, vector<32x128xf32>,
    return
  }
  func.func @transform_0(%arg0: i32) -> (i32, i32) {
    %c0_i32 = arith.constant 0 : i32
    %c0_i32_0 = arith.constant 0 : i32
    return %arg0, %c0_i32 : i32, i32
  }
  func.func @transform_1(%arg0: i32) -> (i32, i32) {
    %c0_i32 = arith.constant 0 : i32
    %c0_i32_0 = arith.constant 0 : i32
    %c0_i32_1 = arith.constant 0 : i32
    return %c0_i32, %c0_i32_0 : i32, i32
  }
  func.func @transform_2(%arg0: i32) -> (i32, i32) {
    %c0_i32 = arith.constant 0 : i32
    %c0_i32_0 = arith.constant 0 : i32
    %c0_i32_1 = arith.constant 0 : i32
    return %c0_i32, %c0_i32_0 : i32, i32
  }
  func.func @transform_3(%arg0: i32) -> (i32, i32) {
    %c0_i32 = arith.constant 0 : i32
    %c0_i32_0 = arith.constant 0 : i32
    return %arg0, %c0_i32 : i32, i32
  }
}

</mosaic_0001>

<llo_original>
// kernel: tpu_custom_call.1
$region0: #{tpu_custom_call.1}
  #allocation0 [shape = 'u32[]', space=smem, size = 0x4, offset = 0x4, fixed_abs, tag = 'smem constant byte address 0x4 - core index']
  #allocation1 [shape = 'u32[144,128]{1,0:T(1,128)}', space=vmem, size = 0x12000, scoped, tag = 'internal scratch']
  %s0 = inlined_call_operand.hbm [shape: f32[128,512], index: 0, kind: input, shape index: {}]
  %s1 = inlined_call_operand.hbm [shape: f32[512,128], index: 1, kind: input, shape index: {}]
  %s2 = inlined_call_operand.vmem [shape: f32[1,128], index: 2, kind: input, shape index: {}]
  %s3 = inlined_call_operand.hbm [shape: f32[128,128], index: 3, kind: output, shape index: {}]
  %s4 = sld [smem:[#allocation0]]
  $region53: #{tpu_custom_call.1} parent=0
    _
  %s6 = ssub.s32 1, %s4
  %s7 = scalar_select 0, %s6, %s4
  $region1: #{tpu_custom_call.1} parent=0
    #allocation2 [shape = 'u8[131072]{0}', space=vmem, size = 0x20000, scoped, tag = 'input window, operand 0']
    #allocation3 [shape = 's32[2]{0}', space=sflag, size = 0x8, scoped, tag = 'scoped memory for tpu_custom_call.1']
    #allocation4 [shape = 's32[2]{0}', space=sflag, size = 0x8, scoped, tag = 'scoped memory for tpu_custom_call.1']
    #allocation5 [shape = 'u8[262144]{0}', space=vmem, size = 0x40000, scoped, tag = 'input window, operand 1, single buffered']
    #allocation6 [shape = 's32[1]{0}', space=sflag, size = 0x4, scoped, tag = 'scoped memory for tpu_custom_call.1']
    #allocation7 [shape = 'u8[32768]{0}', space=vmem, size = 0x8000, scoped, tag = 'output window, operand 0']
    %8 = vsyncpa [#allocation3], 0
    %s9 = scalar_lea.sflag [#allocation3], 1
    %10 = vsyncpa %s9, 0
    %11 = vsyncpa [#allocation6], 0
    %12 = vsyncpa [#allocation4], 0
    %s13 = scalar_lea.sflag [#allocation4], 1
    %14 = vsyncpa %s13, 0
    loop: start=0, step=1, limit=6
    $region2: #{tpu_custom_call.1} parent=1 // loop_pre_header
      _
    $region3: #{tpu_custom_call.1} parent=1 // loop_header
      %s16 = sphi 0, %s20
      %p17 = scmp.ge.s32.totalorder %s16, 6
      %s26 = sphi 0, %s28
      %s29 = sphi 0, %s26
      %s30 = sphi 0, %s29
      %s46 = sphi 0, %s30
      %s50 = sphi 0, %s50
      %s52 = sphi 0, %s50
      %s53 = sphi 0, %s52
      %s67 = sphi 0, %s53
      %s71 = sphi 0, %s71
      %s73 = sphi 0, %s71
      %s74 = sphi 0, %s73
      %s88 = sphi 0, %s74
      %s94 = sphi 0, %s96
      %s97 = sphi 0, %s94
      %s98 = sphi 0, %s97
      %s114 = sphi 0, %s98
    $region4: #{tpu_custom_call.1} parent=1 // loop_header_branch
      %19 = sbr.rel (%p17) target = $region8
    $region5: #{tpu_custom_call.1} parent=1 // loop_body
      %s21 = ssub.s32 %s16, 1
      %s22 = ssub.s32 %s16, 2
      %s23 = sadd.s32 %s16, 1
      %s24 = ssub.s32 %s16, %s23
      %p25 = scmp.eq.s32.totalorder %s24, 0
      %s27 = sadd.s32 %s26, 1
      %s28 = scalar_select %p25, %s26, %s27
      %p31 = pneg %p25
      %p32 = scmp.eq.s32.totalorder %s16, 3
      %p33 = por %p31, %p32
      %p34 = scmp.ne.s32.totalorder %s26, %s29
      %p35 = scmp.eq.s32.totalorder %s16, 0
      %p36 = por %p34, %p35
      %p37 = scmp.ne.s32.totalorder %s26, %s29
      %p38 = scmp.eq.s32.totalorder %s21, 3
      %p39 = por %p37, %p38
      %p40 = scmp.ne.s32.totalorder %s29, %s30
      %p41 = scmp.eq.s32.totalorder %s21, 0
      %p42 = por %p40, %p41
      %p43 = scmp.ne.s32.totalorder %s29, %s30
      %p44 = scmp.eq.s32.totalorder %s22, 3
      %p45 = por %p43, %p44
      %p47 = scmp.ne.s32.totalorder %s30, %s46
      %p48 = scmp.eq.s32.totalorder %s22, 0
      %p49 = por %p47, %p48
      %s51 = sadd.s32 %s50, 1
      %p54 = scmp.eq.s32.totalorder %s16, 3
      %p55 = scmp.ne.s32.totalorder %s50, %s52
      %p56 = scmp.eq.s32.totalorder %s16, 0
      %p57 = por %p55, %p56
      %p58 = scmp.ne.s32.totalorder %s50, %s52
      %p59 = scmp.eq.s32.totalorder %s21, 3
      %p60 = por %p58, %p59
      %p61 = scmp.ne.s32.totalorder %s52, %s53
      %p62 = scmp.eq.s32.totalorder %s21, 0
      %p63 = por %p61, %p62
      %p64 = scmp.ne.s32.totalorder %s52, %s53
      %p65 = scmp.eq.s32.totalorder %s22, 3
      %p66 = por %p64, %p65
      %p68 = scmp.ne.s32.totalorder %s53, %s67
      %p69 = scmp.eq.s32.totalorder %s22, 0
      %p70 = por %p68, %p69
      %s72 = sadd.s32 %s71, 1
      %p75 = scmp.eq.s32.totalorder %s16, 3
      %p76 = scmp.ne.s32.totalorder %s71, %s73
      %p77 = scmp.eq.s32.totalorder %s16, 0
      %p78 = por %p76, %p77
      %p79 = scmp.ne.s32.totalorder %s71, %s73
      %p80 = scmp.eq.s32.totalorder %s21, 3
      %p81 = por %p79, %p80
      %p82 = scmp.ne.s32.totalorder %s73, %s74
      %p83 = scmp.eq.s32.totalorder %s21, 0
      %p84 = por %p82, %p83
      %p85 = scmp.ne.s32.totalorder %s73, %s74
      %p86 = scmp.eq.s32.totalorder %s22, 3
      %p87 = por %p85, %p86
      %p89 = scmp.ne.s32.totalorder %s74, %s88
      %p90 = scmp.eq.s32.totalorder %s22, 0
      %p91 = por %p89, %p90
      %s92 = ssub.s32 %s16, %s23
      %p93 = scmp.eq.s32.totalorder %s92, 0
      %s95 = sadd.s32 %s94, 1
      %s96 = scalar_select %p93, %s94, %s95
      %p99 = pneg %p93
      %p100 = scmp.eq.s32.totalorder %s16, 3
      %p101 = por %p99, %p100
      %p102 = scmp.ne.s32.totalorder %s94, %s97
      %p103 = scmp.eq.s32.totalorder %s16, 0
      %p104 = por %p102, %p103
      %p105 = scmp.ne.s32.totalorder %s94, %s97
      %p106 = scmp.eq.s32.totalorder %s21, 3
      %p107 = por %p105, %p106
      %p108 = scmp.ne.s32.totalorder %s97, %s98
      %p109 = scmp.eq.s32.totalorder %s21, 0
      %p110 = por %p108, %p109
      %p111 = scmp.ne.s32.totalorder %s97, %s98
      %p112 = scmp.eq.s32.totalorder %s22, 3
      %p113 = por %p111, %p112
      %p115 = scmp.ne.s32.totalorder %s98, %s114
      %p116 = scmp.eq.s32.totalorder %s22, 0
      %p117 = por %p115, %p116
      %p118 = scmp.le.s32.totalorder 1, %s16
      %p119 = scmp.lt.s32.totalorder %s16, 5
      %p120 = pnand %p118, %p119
      %p121 = pneg %p120
      // Predicated region
      $region9: #{tpu_custom_call.1} parent=5 // pred_check
        _
      $region10: #{tpu_custom_call.1} parent=5 // pred_check_branch
        %123 = sbr.rel (%p120) target = $region12
      $region11: #{tpu_custom_call.1} parent=5 // pred_region
        %s124 = ssub.s32 %s16, 1
        // Predicated region
        $region13: #{tpu_custom_call.1} parent=11 // pred_check
          %p125 = pneg %p63
        $region14: #{tpu_custom_call.1} parent=11 // pred_check_branch
          %127 = sbr.rel (%p125) target = $region16
        $region15: #{tpu_custom_call.1} parent=11 // pred_region
          %s129 = ssub.s32 8192, 8192
          %130 = vsyncadd [#allocation6], %s129
          %s131 = sshll.u32 [#allocation5], 4
          %s132 = int_to_ptr.vmem [resolvable:$true] %s131
          %137 = dma.hbm_to_vmem [thread:$0]  %s1, 8192, %s132, [#allocation6], 128, 128, 8
        $region16: #{tpu_custom_call.1} parent=11 // pred_fallthru
          _
        // Predicated region
        $region17: #{tpu_custom_call.1} parent=11 // pred_check
          %p138 = pneg %p84
        $region18: #{tpu_custom_call.1} parent=11 // pred_check_branch
          %140 = sbr.rel (%p138) target = $region20
        $region19: #{tpu_custom_call.1} parent=11 // pred_region
          _
        $region20: #{tpu_custom_call.1} parent=11 // pred_fallthru
          _
      $region12: #{tpu_custom_call.1} parent=5 // pred_fallthru
        _
      %p141 = scmp.lt.s32.totalorder %s16, 4
      // Predicated region
      $region21: #{tpu_custom_call.1} parent=5 // pred_check
        %p142 = pneg %p141
      $region22: #{tpu_custom_call.1} parent=5 // pred_check_branch
        %144 = sbr.rel (%p142) target = $region24
      $region23: #{tpu_custom_call.1} parent=5 // pred_region
        // Predicated region
        $region25: #{tpu_custom_call.1} parent=23 // pred_check
          %p145 = pneg %p36
        $region26: #{tpu_custom_call.1} parent=23 // pred_check_branch
          %147 = sbr.rel (%p145) target = $region28
        $region27: #{tpu_custom_call.1} parent=23 // pred_region
          %s148 = sand.u32 %s26, 1
          %s149 = scalar_lea.sflag [#allocation3], %s148
          %s150 = sand.u32 %s26, 1
          %s151 = smul.addr %s150, 128
          %s152 = scalar_lea.vmem [#allocation2], %s151
          %s153 = smul.u32 4, %s16
          %s155 = ssub.s32 2048, 2048
          %156 = vsyncadd %s149, %s155
          %s157 = smul.addr %s153, 4
          %s158 = smul.addr %s157, 128
          %s159 = scalar_lea.hbm %s0, %s158
          %s160 = sshll.u32 %s152, 4
          %s161 = int_to_ptr.vmem [resolvable:$true] %s160
          %166 = dma.hbm_to_vmem [thread:$0]  %s159, 2048, %s161, %s149, 512, 512, 32
        $region28: #{tpu_custom_call.1} parent=23 // pred_fallthru
          _
      $region24: #{tpu_custom_call.1} parent=5 // pred_fallthru
        _
      %p167 = scmp.le.s32.totalorder 1, %s16
      %p168 = scmp.lt.s32.totalorder %s16, 5
      %p169 = pnand %p167, %p168
      %p170 = pneg %p169
      // Predicated region
      $region29: #{tpu_custom_call.1} parent=5 // pred_check
        _
      $region30: #{tpu_custom_call.1} parent=5 // pred_check_branch
        %172 = sbr.rel (%p169) target = $region32
      $region31: #{tpu_custom_call.1} parent=5 // pred_region
        %s173 = ssub.s32 %s16, 1
        %s174 = sand.u32 %s29, 1
        %s175 = scalar_lea.sflag [#allocation3], %s174
        %s176 = sand.u32 %s29, 1
        %s177 = smul.addr %s176, 128
        %s178 = scalar_lea.vmem [#allocation2], %s177
        // Predicated region
        $region33: #{tpu_custom_call.1} parent=31 // pred_check
          %p179 = pneg %p42
        $region34: #{tpu_custom_call.1} parent=31 // pred_check_branch
          %181 = sbr.rel (%p179) target = $region36
        $region35: #{tpu_custom_call.1} parent=31 // pred_region
          %182 = dma.done %s175, 2048
        $region36: #{tpu_custom_call.1} parent=31 // pred_fallthru
          _
        // Predicated region
        $region37: #{tpu_custom_call.1} parent=31 // pred_check
          %p183 = pneg %p63
        $region38: #{tpu_custom_call.1} parent=31 // pred_check_branch
          %185 = sbr.rel (%p183) target = $region40
        $region39: #{tpu_custom_call.1} parent=31 // pred_region
          %186 = dma.done [#allocation6], 8192
        $region40: #{tpu_custom_call.1} parent=31 // pred_fallthru
          _
        %s187 = sand.u32 %s29, 1
        %s188 = scalar_lea.sflag [#allocation3], %s187
        %s189 = sand.u32 %s29, 1
        %s190 = smul.addr %s189, 128
        %s191 = scalar_lea.vmem [#allocation2], %s190
        %p192 = pneg %p42
        %p193 = pneg %p39
        %p194 = pneg %p63
        %p195 = pneg %p60
        %p196 = pneg %p84
        %p197 = pneg %p81
        %p198 = pneg %p110
        %p199 = pneg %p107
        %s200 = sand.u32 %s97, 1
        %s201 = scalar_lea.sflag [#allocation4], %s200
        %s202 = sand.u32 %s97, 1
        %s203 = smul.addr %s202, 32
        %s204 = scalar_lea.vmem [#allocation7], %s203
        %s205 = smul.u32 4, %s21
        %s206 = smul.u32 4, %s21
        %v207 = vld [vmem:[%s178] sm:$0xff]
        %v208 = vld [vmem:[%s178 + $0x8] sm:$0xff]
        %v209 = vld [vmem:[%s178 + $0x10] sm:$0xff]
        %v210 = vld [vmem:[%s178 + $0x18] sm:$0xff]
        %v211 = vld [vmem:[%s178 + $0x20] sm:$0xff]
        %v212 = vld [vmem:[%s178 + $0x28] sm:$0xff]
        %v213 = vld [vmem:[%s178 + $0x30] sm:$0xff]
        %v214 = vld [vmem:[%s178 + $0x38] sm:$0xff]
        %v215 = vld [vmem:[%s178 + $0x40] sm:$0xff]
        %v216 = vld [vmem:[%s178 + $0x48] sm:$0xff]
        %v217 = vld [vmem:[%s178 + $0x50] sm:$0xff]
        %v218 = vld [vmem:[%s178 + $0x58] sm:$0xff]
        %v219 = vld [vmem:[%s178 + $0x60] sm:$0xff]
        %v220 = vld [vmem:[%s178 + $0x68] sm:$0xff]
        %v221 = vld [vmem:[%s178 + $0x70] sm:$0xff]
        %v222 = vld [vmem:[%s178 + $0x78] sm:$0xff]
        %v223 = vld [vmem:[#allocation5] sm:$0xff]
        %v224 = vld [vmem:[#allocation5 + $0x8] sm:$0xff]
        %v225 = vld [vmem:[#allocation5 + $0x10] sm:$0xff]
        %v226 = vld [vmem:[#allocation5 + $0x18] sm:$0xff]
        %v227 = vld [vmem:[#allocation5 + $0x20] sm:$0xff]
        %v228 = vld [vmem:[#allocation5 + $0x28] sm:$0xff]
        %v229 = vld [vmem:[#allocation5 + $0x30] sm:$0xff]
        %v230 = vld [vmem:[#allocation5 + $0x38] sm:$0xff]
        %v231 = vld [vmem:[#allocation5 + $0x40] sm:$0xff]
        %v232 = vld [vmem:[#allocation5 + $0x48] sm:$0xff]
        %v233 = vld [vmem:[#allocation5 + $0x50] sm:$0xff]
        %v234 = vld [vmem:[#allocation5 + $0x58] sm:$0xff]
        %v235 = vld [vmem:[#allocation5 + $0x60] sm:$0xff]
        %v236 = vld [vmem:[#allocation5 + $0x68] sm:$0xff]
        %v237 = vld [vmem:[#allocation5 + $0x70] sm:$0xff]
        %v238 = vld [vmem:[#allocation5 + $0x78] sm:$0xff]
        %v239 = vld [vmem:[#allocation5 + $0x80] sm:$0xff]
        %v240 = vld [vmem:[#allocation5 + $0x88] sm:$0xff]
        %v241 = vld [vmem:[#allocation5 + $0x90] sm:$0xff]
        %v242 = vld [vmem:[#allocation5 + $0x98] sm:$0xff]
        %v243 = vld [vmem:[#allocation5 + $0xa0] sm:$0xff]
        %v244 = vld [vmem:[#allocation5 + $0xa8] sm:$0xff]
        %v245 = vld [vmem:[#allocation5 + $0xb0] sm:$0xff]
        %v246 = vld [vmem:[#allocation5 + $0xb8] sm:$0xff]
        %v247 = vld [vmem:[#allocation5 + $0xc0] sm:$0xff]
        %v248 = vld [vmem:[#allocation5 + $0xc8] sm:$0xff]
        %v249 = vld [vmem:[#allocation5 + $0xd0] sm:$0xff]
        %v250 = vld [vmem:[#allocation5 + $0xd8] sm:$0xff]
        %v251 = vld [vmem:[#allocation5 + $0xe0] sm:$0xff]
        %v252 = vld [vmem:[#allocation5 + $0xe8] sm:$0xff]
        %v253 = vld [vmem:[#allocation5 + $0xf0] sm:$0xff]
        %v254 = vld [vmem:[#allocation5 + $0xf8] sm:$0xff]
        %v255 = vld [vmem:[#allocation5 + $0x100] sm:$0xff]
        %v256 = vld [vmem:[#allocation5 + $0x108] sm:$0xff]
        %v257 = vld [vmem:[#allocation5 + $0x110] sm:$0xff]
        %v258 = vld [vmem:[#allocation5 + $0x118] sm:$0xff]
        %v259 = vld [vmem:[#allocation5 + $0x120] sm:$0xff]
        %v260 = vld [vmem:[#allocation5 + $0x128] sm:$0xff]
        %v261 = vld [vmem:[#allocation5 + $0x130] sm:$0xff]
        %v262 = vld [vmem:[#allocation5 + $0x138] sm:$0xff]
        %v263 = vld [vmem:[#allocation5 + $0x140] sm:$0xff]
        %v264 = vld [vmem:[#allocation5 + $0x148] sm:$0xff]
        %v265 = vld [vmem:[#allocation5 + $0x150] sm:$0xff]
        %v266 = vld [vmem:[#allocation5 + $0x158] sm:$0xff]
        %v267 = vld [vmem:[#allocation5 + $0x160] sm:$0xff]
        %v268 = vld [vmem:[#allocation5 + $0x168] sm:$0xff]
        %v269 = vld [vmem:[#allocation5 + $0x170] sm:$0xff]
        %v270 = vld [vmem:[#allocation5 + $0x178] sm:$0xff]
        %v271 = vld [vmem:[#allocation5 + $0x180] sm:$0xff]
        %v272 = vld [vmem:[#allocation5 + $0x188] sm:$0xff]
        %v273 = vld [vmem:[#allocation5 + $0x190] sm:$0xff]
        %v274 = vld [vmem:[#allocation5 + $0x198] sm:$0xff]
        %v275 = vld [vmem:[#allocation5 + $0x1a0] sm:$0xff]
        %v276 = vld [vmem:[#allocation5 + $0x1a8] sm:$0xff]
        %v277 = vld [vmem:[#allocation5 + $0x1b0] sm:$0xff]
        %v278 = vld [vmem:[#allocation5 + $0x1b8] sm:$0xff]
        %v279 = vld [vmem:[#allocation5 + $0x1c0] sm:$0xff]
        %v280 = vld [vmem:[#allocation5 + $0x1c8] sm:$0xff]
        %v281 = vld [vmem:[#allocation5 + $0x1d0] sm:$0xff]
        %v282 = vld [vmem:[#allocation5 + $0x1d8] sm:$0xff]
        %v283 = vld [vmem:[#allocation5 + $0x1e0] sm:$0xff]
        %v284 = vld [vmem:[#allocation5 + $0x1e8] sm:$0xff]
        %v285 = vld [vmem:[#allocation5 + $0x1f0] sm:$0xff]
        %v286 = vld [vmem:[#allocation5 + $0x1f8] sm:$0xff]
        %v287 = vld [vmem:[%s2] sm:$0x1]
        %v289 = vlaneseq
        %v290 = vshrl.u32 %v289, 7
        %v291 = vsub.s32 0, %v290
        %v292 = vrot.slane %v287, %v291
        %294 = vmatprep.subr.mxu0 0.0
        %295 = vmatpush1.msra.mxu0 %v223
        %296 = vmatprep.subr.mxu0 0.0
        %297 = vmatpush1.msra.mxu0 %v224
        %298 = vmatprep.subr.mxu0 0.0
        %299 = vmatpush1.msra.mxu0 %v225
        %300 = vmatprep.subr.mxu0 0.0
        %301 = vmatpush1.msra.mxu0 %v226
        %302 = vmatprep.subr.mxu0 0.0
        %303 = vmatpush1.msra.mxu0 %v227
        %304 = vmatprep.subr.mxu0 0.0
        %305 = vmatpush1.msra.mxu0 %v228
        %306 = vmatprep.subr.mxu0 0.0
        %307 = vmatpush1.msra.mxu0 %v229
        %308 = vmatprep.subr.mxu0 0.0
        %309 = vmatpush1.msra.mxu0 %v230
        %310 = vmatprep.subr.mxu0 0.0
        %311 = vmatpush1.msra.mxu0 %v231
        %312 = vmatprep.subr.mxu0 0.0
        %313 = vmatpush1.msra.mxu0 %v232
        %314 = vmatprep.subr.mxu0 0.0
        %315 = vmatpush1.msra.mxu0 %v233
        %316 = vmatprep.subr.mxu0 0.0
        %317 = vmatpush1.msra.mxu0 %v234
        %318 = vmatprep.subr.mxu0 0.0
        %319 = vmatpush1.msra.mxu0 %v235
        %320 = vmatprep.subr.mxu0 0.0
        %321 = vmatpush1.msra.mxu0 %v236
        %322 = vmatprep.subr.mxu0 0.0
        %323 = vmatpush1.msra.mxu0 %v237
        %324 = vmatprep.subr.mxu0 0.0
        %325 = vmatpush1.msra.mxu0 %v238
        %326 = vmatprep.subr.mxu0 0.0
        %327 = vmatpush1.msra.mxu0 %v239
        %328 = vmatprep.subr.mxu0 0.0
        %329 = vmatpush1.msra.mxu0 %v240
        %330 = vmatprep.subr.mxu0 0.0
        %331 = vmatpush1.msra.mxu0 %v241
        %332 = vmatprep.subr.mxu0 0.0
        %333 = vmatpush1.msra.mxu0 %v242
        %334 = vmatprep.subr.mxu0 0.0
        %335 = vmatpush1.msra.mxu0 %v243
        %336 = vmatprep.subr.mxu0 0.0
        %337 = vmatpush1.msra.mxu0 %v244
        %338 = vmatprep.subr.mxu0 0.0
        %339 = vmatpush1.msra.mxu0 %v245
        %340 = vmatprep.subr.mxu0 0.0
        %341 = vmatpush1.msra.mxu0 %v246
        %342 = vmatprep.subr.mxu0 0.0
        %343 = vmatpush1.msra.mxu0 %v247
        %344 = vmatprep.subr.mxu0 0.0
        %345 = vmatpush1.msra.mxu0 %v248
        %346 = vmatprep.subr.mxu0 0.0
        %347 = vmatpush1.msra.mxu0 %v249
        %348 = vmatprep.subr.mxu0 0.0
        %349 = vmatpush1.msra.mxu0 %v250
        %350 = vmatprep.subr.mxu0 0.0
        %351 = vmatpush1.msra.mxu0 %v251
        %352 = vmatprep.subr.mxu0 0.0
        %353 = vmatpush1.msra.mxu0 %v252
        %354 = vmatprep.subr.mxu0 0.0
        %355 = vmatpush1.msra.mxu0 %v253
        %356 = vmatprep.subr.mxu0 0.0
        %357 = vmatpush1.msra.mxu0 %v254
        %358 = vmatprep.mubr.f32.mxu0 %v208
        %359 = vmatmul.mubr.f32.gmra.mrb[0].mxu0 %v207
        %v360 = vpop.f32.mrb[0].mxu0
        %v361 = vadd.f32 %v292, %v360
        %v362 = vpop.f32.mrb[0].mxu0
        %363 = vmatprep.mubr.f32.mxu0 %v212
        %364 = vmatmul.mubr.f32.gmra.mrb[0].mxu0 %v211
        %v365 = vpop.f32.mrb[0].mxu0
        %v366 = vadd.f32 %v292, %v365
        %v367 = vpop.f32.mrb[0].mxu0
        %368 = vmatprep.mubr.f32.mxu0 %v216
        %369 = vmatmul.mubr.f32.gmra.mrb[0].mxu0 %v215
        %v370 = vpop.f32.mrb[0].mxu0
        %v371 = vadd.f32 %v292, %v370
        %v372 = vpop.f32.mrb[0].mxu0
        %373 = vmatprep.mubr.f32.mxu0 %v220
        %374 = vmatmul.mubr.f32.gmra.mrb[0].mxu0 %v219
        %v375 = vpop.f32.mrb[0].mxu0
        %v376 = vadd.f32 %v292, %v375
        %v377 = vpop.f32.mrb[0].mxu0
        %378 = vdwg.mxu0
        %379 = vmatprep.subr.mxu0 0.0
        %380 = vmatpush1.msra.mxu0 %v255
        %381 = vmatprep.subr.mxu0 0.0
        %382 = vmatpush1.msra.mxu0 %v256
        %383 = vmatprep.subr.mxu0 0.0
        %384 = vmatpush1.msra.mxu0 %v257
        %385 = vmatprep.subr.mxu0 0.0
        %386 = vmatpush1.msra.mxu0 %v258
        %387 = vmatprep.subr.mxu0 0.0
        %388 = vmatpush1.msra.mxu0 %v259
        %389 = vmatprep.subr.mxu0 0.0
        %390 = vmatpush1.msra.mxu0 %v260
        %391 = vmatprep.subr.mxu0 0.0
        %392 = vmatpush1.msra.mxu0 %v261
        %393 = vmatprep.subr.mxu0 0.0
        %394 = vmatpush1.msra.mxu0 %v262
        %395 = vmatprep.subr.mxu0 0.0
        %396 = vmatpush1.msra.mxu0 %v263
        %397 = vmatprep.subr.mxu0 0.0
        %398 = vmatpush1.msra.mxu0 %v264
        %399 = vmatprep.subr.mxu0 0.0
        %400 = vmatpush1.msra.mxu0 %v265
        %401 = vmatprep.subr.mxu0 0.0
        %402 = vmatpush1.msra.mxu0 %v266
        %403 = vmatprep.subr.mxu0 0.0
        %404 = vmatpush1.msra.mxu0 %v267
        %405 = vmatprep.subr.mxu0 0.0
        %406 = vmatpush1.msra.mxu0 %v268
        %407 = vmatprep.subr.mxu0 0.0
        %408 = vmatpush1.msra.mxu0 %v269
        %409 = vmatprep.subr.mxu0 0.0
        %410 = vmatpush1.msra.mxu0 %v270
        %411 = vmatprep.subr.mxu0 0.0
        %412 = vmatpush1.msra.mxu0 %v271
        %413 = vmatprep.subr.mxu0 0.0
        %414 = vmatpush1.msra.mxu0 %v272
        %415 = vmatprep.subr.mxu0 0.0
        %416 = vmatpush1.msra.mxu0 %v273
        %417 = vmatprep.subr.mxu0 0.0
        %418 = vmatpush1.msra.mxu0 %v274
        %419 = vmatprep.subr.mxu0 0.0
        %420 = vmatpush1.msra.mxu0 %v275
        %421 = vmatprep.subr.mxu0 0.0
        %422 = vmatpush1.msra.mxu0 %v276
        %423 = vmatprep.subr.mxu0 0.0
        %424 = vmatpush1.msra.mxu0 %v277
        %425 = vmatprep.subr.mxu0 0.0
        %426 = vmatpush1.msra.mxu0 %v278
        %427 = vmatprep.subr.mxu0 0.0
        %428 = vmatpush1.msra.mxu0 %v279
        %429 = vmatprep.subr.mxu0 0.0
        %430 = vmatpush1.msra.mxu0 %v280
        %431 = vmatprep.subr.mxu0 0.0
        %432 = vmatpush1.msra.mxu0 %v281
        %433 = vmatprep.subr.mxu0 0.0
        %434 = vmatpush1.msra.mxu0 %v282
        %435 = vmatprep.subr.mxu0 0.0
        %436 = vmatpush1.msra.mxu0 %v283
        %437 = vmatprep.subr.mxu0 0.0
        %438 = vmatpush1.msra.mxu0 %v284
        %439 = vmatprep.subr.mxu0 0.0
        %440 = vmatpush1.msra.mxu0 %v285
        %441 = vmatprep.subr.mxu0 0.0
        %442 = vmatpush1.msra.mxu0 %v286
        %443 = vmatprep.mubr.f32.mxu0 %v210
        %444 = vmatmul.mubr.f32.gmra.mrb[0].mxu0 %v209
        %v445 = vpop.f32.mrb[0].mxu0
        %v446 = vadd.f32 %v361, %v445
        %v447 = vpop.f32.mrb[0].mxu0
        %448 = vmatprep.mubr.f32.mxu0 %v214
        %449 = vmatmul.mubr.f32.gmra.mrb[0].mxu0 %v213
        %v450 = vpop.f32.mrb[0].mxu0
        %v451 = vadd.f32 %v366, %v450
        %v452 = vpop.f32.mrb[0].mxu0
        %453 = vmatprep.mubr.f32.mxu0 %v218
        %454 = vmatmul.mubr.f32.gmra.mrb[0].mxu0 %v217
        %v455 = vpop.f32.mrb[0].mxu0
        %v456 = vadd.f32 %v371, %v455
        %v457 = vpop.f32.mrb[0].mxu0
        %458 = vmatprep.mubr.f32.mxu0 %v222
        %459 = vmatmul.mubr.f32.gmra.mrb[0].mxu0 %v221
        %v460 = vpop.f32.mrb[0].mxu0
        %v461 = vadd.f32 %v376, %v460
        %v462 = vpop.f32.mrb[0].mxu0
        %463 = vdwg.mxu0
        %464 = vst [vmem:[%s204] sm:$0xff] %v446
        %465 = vst [vmem:[%s204 + $0x8] sm:$0xff] %v451
        %466 = vst [vmem:[%s204 + $0x10] sm:$0xff] %v456
        %467 = vst [vmem:[%s204 + $0x18] sm:$0xff] %v461
        %s468 = sand.u32 %s97, 1
        %s469 = scalar_lea.sflag [#allocation4], %s468
        %s470 = sand.u32 %s97, 1
        %s471 = smul.addr %s470, 32
        %s472 = scalar_lea.vmem [#allocation7], %s471
        // Predicated region
        $region41: #{tpu_custom_call.1} parent=31 // pred_check
          %p473 = pneg %p107
        $region42: #{tpu_custom_call.1} parent=31 // pred_check_branch
          %475 = sbr.rel (%p473) target = $region44
        $region43: #{tpu_custom_call.1} parent=31 // pred_region
          %s476 = smul.u32 4, %s21
          %s478 = ssub.s32 512, 512
          %479 = vsyncadd %s469, %s478
          %s480 = smul.addr %s476, 128
          %s481 = scalar_lea.hbm %s3, %s480
          %s482 = sshll.u32 %s472, 4
          %s483 = int_to_ptr.vmem [resolvable:$true] %s482
          %488 = dma.vmem_to_hbm [thread:$0]  %s483, 512, %s481, %s469, 128, 128, 8
        $region44: #{tpu_custom_call.1} parent=31 // pred_fallthru
          _
      $region32: #{tpu_custom_call.1} parent=5 // pred_fallthru
        _
      %p489 = scmp.le.s32.totalorder 2, %s16
      // Predicated region
      $region45: #{tpu_custom_call.1} parent=5 // pred_check
        %p490 = pneg %p489
      $region46: #{tpu_custom_call.1} parent=5 // pred_check_branch
        %492 = sbr.rel (%p490) target = $region48
      $region47: #{tpu_custom_call.1} parent=5 // pred_region
        %s493 = ssub.s32 %s16, 2
        // Predicated region
        $region49: #{tpu_custom_call.1} parent=47 // pred_check
          %p494 = pneg %p113
        $region50: #{tpu_custom_call.1} parent=47 // pred_check_branch
          %496 = sbr.rel (%p494) target = $region52
        $region51: #{tpu_custom_call.1} parent=47 // pred_region
          %s497 = sand.u32 %s98, 1
          %s498 = scalar_lea.sflag [#allocation4], %s497
          %s499 = sand.u32 %s98, 1
          %s500 = smul.addr %s499, 32
          %s501 = scalar_lea.vmem [#allocation7], %s500
          %502 = dma.done %s498, 512
        $region52: #{tpu_custom_call.1} parent=47 // pred_fallthru
          _
      $region48: #{tpu_custom_call.1} parent=5 // pred_fallthru
        _
    $region6: #{tpu_custom_call.1} parent=1 // loop_footer
      %s20 = sadd.s32 1, %s16
    $region7: #{tpu_custom_call.1} parent=1 // loop_footer_branch
      %15 = sbr.rel target = $region3
    $region8: #{tpu_custom_call.1} parent=1 // loop_exit
      _
    %503 = vsyncpa [#allocation3], 1
    %s504 = scalar_lea.sflag [#allocation3], 1
    %505 = vsyncpa %s504, 1
    %506 = vsyncpa [#allocation6], 1
    %507 = vsyncpa [#allocation4], 1
    %s508 = scalar_lea.sflag [#allocation4], 1
    %509 = vsyncpa %s508, 1

</llo_original>
